<compile_context>
chip_gen: v7x
topology: tpu7x:2x2x1
jax: 0.10.0
libtpu: 0.0.40
codegen_flags: <defaults>
</compile_context>

<pallas_src>
import math

import jax
import jax.numpy as jnp
from jax.experimental import pallas as pl
from jax.experimental.pallas import tpu as pltpu

_LANES = 128
_SUBLANES = 8


def _round_up(x: int, m: int) -> int:
    return -(-x // m) * m


def _make_js_partial_kernel(tile_rows: int, valid_rows: int, ragged: bool):
    """Kernel: (tile_rows, 128) blocks of P and Q -> one (8, 128) partial sum."""
    nsub = tile_rows // _SUBLANES

    def kernel(p_ref, q_ref, out_ref):
        p_raw = p_ref[...].astype(jnp.float32)
        q_raw = q_ref[...].astype(jnp.float32)
        # M is built from the *unclamped* inputs; clamps live inside KL_div.
        p = jnp.maximum(p_raw, 1e-15)
        q = jnp.maximum(q_raw, 1e-15)
        m = jnp.maximum(0.5 * (p_raw + q_raw), 1e-15)
        # kl_p + kl_q elementwise:
        #   p*log(p/m) + q*log(q/m) = p*log p + q*log q - (p+q)*log m
        terms = p * jnp.log(p) + q * jnp.log(q) - (p + q) * jnp.log(m)
        if ragged:
            # Last grid block extends past the array: out-of-bounds rows hold
            # unspecified data -> zero their contribution (cheap VPU select).
            row0 = pl.program_id(0) * tile_rows
            rows = row0 + jax.lax.broadcasted_iota(
                jnp.int32, (tile_rows, _LANES), 0)
            terms = jnp.where(rows < valid_rows, terms, 0.0)
        # (tile_rows, 128) -> (nsub, 8, 128): layout no-op reshape + vreg-wise
        # VPU adds; the cross-lane reduction happens once, in the wrapper.
        out_ref[...] = jnp.sum(terms.reshape(nsub, _SUBLANES, _LANES), axis=0)

    return kernel


def js_loss(P: jax.Array, Q: jax.Array, *, tile_rows: int = 2048) -> jax.Array:
    """JS divergence loss. P, Q: (B, C, K). Returns a scalar float32."""
    assert P.shape == Q.shape and P.ndim == 3, (P.shape, Q.shape)
    assert tile_rows % _SUBLANES == 0, tile_rows
    B, C, K = P.shape
    num_rows_bc = B * C                     # mean over JS, which has shape (B, C)
    scale = 0.5 / (math.log(2.0) * num_rows_bc)

    # ---- wrapper-side lane-dense view (copy-free when already aligned) ------
    n_elems = B * C * K
    # Pad only to the next (8 x 128)-element boundary; zeros contribute exactly 0.
    padded_rows = max(_SUBLANES, _round_up(_round_up(n_elems, _LANES) // _LANES,
                                           _SUBLANES))
    pad_elems = padded_rows * _LANES - n_elems

    p_flat = P.reshape(-1)
    q_flat = Q.reshape(-1)
    if pad_elems:
        p_flat = jnp.pad(p_flat, (0, pad_elems))
        q_flat = jnp.pad(q_flat, (0, pad_elems))
    p2 = p_flat.reshape(padded_rows, _LANES)
    q2 = q_flat.reshape(padded_rows, _LANES)

    # Tile rows: multiple of 8, never larger than the array (so only the LAST
    # block can be partial).  tm = 2048 -> 1 MiB f32 per input block; 2 inputs x
    # 2 pipeline buffers = 4 MiB, well under every generation's scoped VMEM.
    tm = min(tile_rows, padded_rows)
    num_tiles = -(-padded_rows // tm)
    ragged = (padded_rows % tm) != 0        # last block partial -> mask in-kernel

    in_spec = pl.BlockSpec((tm, _LANES), lambda i: (i, 0))
    partials = pl.pallas_call(
        _make_js_partial_kernel(tm, padded_rows, ragged),
        out_shape=jax.ShapeDtypeStruct((num_tiles * _SUBLANES, _LANES),
                                       jnp.float32),
        grid_spec=pltpu.PrefetchScalarGridSpec(
            num_scalar_prefetch=0,
            grid=(num_tiles,),
            in_specs=[in_spec, in_spec],
            out_specs=pl.BlockSpec((_SUBLANES, _LANES), lambda i: (i, 0)),
        ),
        compiler_params=pltpu.CompilerParams(
            # Every tile writes its own output block -> true parallel axis
            # (both TensorCores on v7x; no serialized scalar accumulator).
            dimension_semantics=("parallel",),
            vmem_limit_bytes=32 * 1024 * 1024,
        ),
    )(p2, q2)

    # Tiny final reduction over num_tiles*8*128 partials, then the folded scale.
    return (jnp.sum(partials, dtype=jnp.float32) * scale).astype(jnp.float32)


def js_loss_ref(P: jax.Array, Q: jax.Array) -> jax.Array:
    """Pure-JAX reference mirroring the PyTorch module."""
    M = 0.5 * (P + Q)

    def kl_div(A, B_):
        A = jnp.maximum(A, 1e-15)     # torch.clamp(min=1e-15)
        B_ = jnp.maximum(B_, 1e-15)
        return jnp.sum(A * jnp.log(A / B_), axis=2)

    JS = 0.5 * (kl_div(P, M) + kl_div(Q, M)) / jnp.log(2.0)
    return jnp.mean(JS)


def _check(B, C, K, key, **kw):
    kp, kq = jax.random.split(key)
    # Probability-like inputs (positive, normalized over dim 2).
    P = jax.nn.softmax(jax.random.normal(kp, (B, C, K), dtype=jnp.float32), axis=2)
    Q = jax.nn.softmax(jax.random.normal(kq, (B, C, K), dtype=jnp.float32), axis=2)
    out = jax.block_until_ready(js_loss(P, Q, **kw))
    ref = jax.block_until_ready(js_loss_ref(P, Q))
    assert out.shape == (), f"expected scalar, got {out.shape}"
    assert jnp.allclose(out, ref, rtol=3e-4, atol=1e-6), (B, C, K, out, ref)


if __name__ == "__main__":
    key = jax.random.PRNGKey(0)
    k0, k1, k2, k3 = jax.random.split(key, 4)
    # Small shape implied by the module: (batch=2, channels=4, K=16), dim-2 reduce.
    _check(2, 4, 16, k0)
    # Unaligned element count: exercises the tiny sublane zero-pad, single tile.
    _check(4, 16, 1031, k1)
    # Pad + ragged multi-tile grid: exercises the in-kernel partial-block mask.
    _check(3, 5, 701, k2, tile_rows=64)
    # Copy-free (1024-aligned) multi-tile parallel grid, no mask.
    _check(2, 8, 4096, k3, tile_rows=256)
    print("KERNEL_OK")
</pallas_src>

<mosaic_0001>
module attributes {stable_mosaic.version = 11 : i64} {
  func.func @kernel(%arg0: i32, %arg1: memref<8x128xf32, #tpu.memory_space<vmem>>, %arg2: memref<8x128xf32, #tpu.memory_space<vmem>>, %arg3: memref<8x128xf32, #tpu.memory_space<vmem>>) attributes {dimension_semantics = [#tpu.dimension_semantics<parallel>], iteration_bounds = array<i64: 1>, scalar_prefetch = 0 : i64, scratch_operands = 0 : i64, tpu.core_type = #tpu.core_type<tc>, window_params = [{transform_indices = @transform_0, window_bounds = array<i64: 8, 128>}, {transform_indices = @transform_1, window_bounds = array<i64: 8, 128>}, {transform_indices = @transform_2, window_bounds = array<i64: 8, 128>}]} {
    %c0 = arith.constant 0 : index
    %c0_0 = arith.constant 0 : index
    %0 = vector.load %arg1[%c0, %c0_0] : memref<8x128xf32, #tpu.memory_space<vmem>>, vector<8x128xf32>
    %c0_1 = arith.constant 0 : index
    %c0_2 = arith.constant 0 : index
    %1 = vector.load %arg2[%c0_1, %c0_2] : memref<8x128xf32, #tpu.memory_space<vmem>>, vector<8x128xf32>
    %cst = arith.constant 1.000000e-15 : f32
    %2 = vector.broadcast %cst : f32 to vector<8x128xf32>
    %3 = arith.maximumf %0, %2 : vector<8x128xf32>
    %cst_3 = arith.constant 1.000000e-15 : f32
    %4 = vector.broadcast %cst_3 : f32 to vector<8x128xf32>
    %5 = arith.maximumf %1, %4 : vector<8x128xf32>
    %6 = arith.addf %0, %1 : vector<8x128xf32>
    %cst_4 = arith.constant 5.000000e-01 : f32
    %7 = vector.broadcast %cst_4 : f32 to vector<8x128xf32>
    %8 = arith.mulf %7, %6 : vector<8x128xf32>
    %cst_5 = arith.constant 1.000000e-15 : f32
    %9 = vector.broadcast %cst_5 : f32 to vector<8x128xf32>
    %10 = arith.maximumf %8, %9 : vector<8x128xf32>
    %11 = math.log %3 : vector<8x128xf32>
    %12 = arith.mulf %3, %11 : vector<8x128xf32>
    %13 = math.log %5 : vector<8x128xf32>
    %14 = arith.mulf %5, %13 : vector<8x128xf32>
    %15 = arith.addf %12, %14 : vector<8x128xf32>
    %16 = arith.addf %3, %5 : vector<8x128xf32>
    %17 = math.log %10 : vector<8x128xf32>
    %18 = arith.mulf %16, %17 : vector<8x128xf32>
    %19 = arith.subf %15, %18 : vector<8x128xf32>
    %20 = vector.shape_cast %19 : vector<8x128xf32> to vector<1x8x128xf32>
    %cst_6 = arith.constant dense<0.000000e+00> : vector<8x128xf32>
    %21 = vector.multi_reduction <add>, %20, %cst_6 [0] : vector<1x8x128xf32> to vector<8x128xf32>
    %c0_7 = arith.constant 0 : index
    %c0_8 = arith.constant 0 : index
    %22 = vector.load %arg3[%c0_7, %c0_8] : memref<8x128xf32, #tpu.memory_space<vmem>>, vector<8x128xf32>
    tpu.vector_store %arg3[%c0_7, %c0_8], %21 {strides = array<i32>} : memref<8x128xf32, #tpu.memory_space<vmem>>, vector<8x128xf32>,
    return
  }
  func.func @transform_0(%arg0: i32) -> (i32, i32) {
    %c0_i32 = arith.constant 0 : i32
    %c0_i32_0 = arith.constant 0 : i32
    return %arg0, %c0_i32 : i32, i32
  }
  func.func @transform_1(%arg0: i32) -> (i32, i32) {
    %c0_i32 = arith.constant 0 : i32
    %c0_i32_0 = arith.constant 0 : i32
    return %arg0, %c0_i32 : i32, i32
  }
  func.func @transform_2(%arg0: i32) -> (i32, i32) {
    %c0_i32 = arith.constant 0 : i32
    %c0_i32_0 = arith.constant 0 : i32
    return %arg0, %c0_i32 : i32, i32
  }
}

</mosaic_0001>

<llo_original>
// kernel: tpu_custom_call.1
$region0: #{tpu_custom_call.1}
  #allocation0 [shape = 'u32[]', space=smem, size = 0x4, offset = 0x4, fixed_abs, tag = 'smem constant byte address 0x4 - core index']
  #allocation1 [shape = 'u32[144,128]{1,0:T(1,128)}', space=vmem, size = 0x12000, scoped, tag = 'internal scratch']
  %s0 = inlined_call_operand.hbm [shape: f32[8,128], index: 0, kind: input, shape index: {}]
  %s1 = inlined_call_operand.hbm [shape: f32[8,128], index: 1, kind: input, shape index: {}]
  %s2 = inlined_call_operand.hbm [shape: f32[8,128], index: 2, kind: output, shape index: {}]
  %s3 = sld [smem:[#allocation0]]
  $region26: #{tpu_custom_call.1} parent=0
    _
  %s5 = ssub.s32 1, %s3
  %s6 = scalar_select 0, %s5, %s3
  $region1: #{tpu_custom_call.1} parent=0
    #allocation2 [shape = 'u8[4096]{0}', space=vmem, size = 0x1000, scoped, tag = 'input window, operand 0, single buffered']
    #allocation3 [shape = 's32[1]{0}', space=sflag, size = 0x4, scoped, tag = 'scoped memory for tpu_custom_call.1']
    #allocation4 [shape = 's32[1]{0}', space=sflag, size = 0x4, scoped, tag = 'scoped memory for tpu_custom_call.1']
    #allocation5 [shape = 'u8[4096]{0}', space=vmem, size = 0x1000, scoped, tag = 'input window, operand 1, single buffered']
    #allocation6 [shape = 's32[1]{0}', space=sflag, size = 0x4, scoped, tag = 'scoped memory for tpu_custom_call.1']
    #allocation7 [shape = 'u8[4096]{0}', space=vmem, size = 0x1000, scoped, tag = 'output window, operand 0, single buffered']
    %7 = vsyncpa [#allocation3], 0
    %8 = vsyncpa [#allocation6], 0
    %9 = vsyncpa [#allocation4], 0
    // Predicated region
    $region2: #{tpu_custom_call.1} parent=1 // pred_check
      _
    $region3: #{tpu_custom_call.1} parent=1 // pred_check_branch
      %11 = sbr.rel (0) target = $region5
    $region4: #{tpu_custom_call.1} parent=1 // pred_region
      %s13 = ssub.s32 128, 128
      %14 = vsyncadd [#allocation3], %s13
      %s16 = sshll.u32 [#allocation2], 4
      %s17 = int_to_ptr.vmem [resolvable:$true] %s16
      %19 = dma.hbm_to_vmem [thread:$0]  %s0, 128, %s17, [#allocation3]
    $region5: #{tpu_custom_call.1} parent=1 // pred_fallthru
      _
    // Predicated region
    $region6: #{tpu_custom_call.1} parent=1 // pred_check
      _
    $region7: #{tpu_custom_call.1} parent=1 // pred_check_branch
      %21 = sbr.rel (0) target = $region9
    $region8: #{tpu_custom_call.1} parent=1 // pred_region
      %s23 = ssub.s32 128, 128
      %24 = vsyncadd [#allocation6], %s23
      %s26 = sshll.u32 [#allocation5], 4
      %s27 = int_to_ptr.vmem [resolvable:$true] %s26
      %29 = dma.hbm_to_vmem [thread:$0]  %s1, 128, %s27, [#allocation6]
    $region9: #{tpu_custom_call.1} parent=1 // pred_fallthru
      _
    // Predicated region
    $region10: #{tpu_custom_call.1} parent=1 // pred_check
      _
    $region11: #{tpu_custom_call.1} parent=1 // pred_check_branch
      %31 = sbr.rel (0) target = $region13
    $region12: #{tpu_custom_call.1} parent=1 // pred_region
      %32 = dma.done [#allocation3], 128
    $region13: #{tpu_custom_call.1} parent=1 // pred_fallthru
      _
    // Predicated region
    $region14: #{tpu_custom_call.1} parent=1 // pred_check
      _
    $region15: #{tpu_custom_call.1} parent=1 // pred_check_branch
      %34 = sbr.rel (0) target = $region17
    $region16: #{tpu_custom_call.1} parent=1 // pred_region
      %35 = dma.done [#allocation6], 128
    $region17: #{tpu_custom_call.1} parent=1 // pred_fallthru
      _
    %v36 = vld [vmem:[#allocation2] sm:$0xff]
    %v37 = vld [vmem:[#allocation5] sm:$0xff]
    %v38 = vmax.f32 %v36, 1e-15
    %v39 = vmax.f32 %v37, 1e-15
    %v40 = vadd.f32 %v36, %v37
    %v41 = vmul.f32 %v40, 0.5
    %v42 = vmax.f32 %v41, 1e-15
    %v43 = vlog2.pop %v38
    %v44 = vmul.f32 %v43, 0.6931472
    %v45 = vmul.f32 %v38, %v44
    %v46 = vlog2.pop %v39
    %v47 = vmul.f32 %v46, 0.6931472
    %v48 = vmul.f32 %v39, %v47
    %v49 = vadd.f32 %v45, %v48
    %v50 = vadd.f32 %v38, %v39
    %v51 = vlog2.pop %v42
    %v52 = vmul.f32 %v51, 0.6931472
    %v53 = vmul.f32 %v50, %v52
    %v54 = vsub.f32 %v49, %v53
    %v55 = vadd.f32 %v54, 0.0
    %56 = vst [vmem:[#allocation7] sm:$0xff] %v55
    // Predicated region
    $region18: #{tpu_custom_call.1} parent=1 // pred_check
      _
    $region19: #{tpu_custom_call.1} parent=1 // pred_check_branch
      %58 = sbr.rel (0) target = $region21
    $region20: #{tpu_custom_call.1} parent=1 // pred_region
      %s60 = ssub.s32 128, 128
      %61 = vsyncadd [#allocation4], %s60
      %s63 = sshll.u32 [#allocation7], 4
      %s64 = int_to_ptr.vmem [resolvable:$true] %s63
      %66 = dma.vmem_to_hbm [thread:$0]  %s64, 128, %s2, [#allocation4]
    $region21: #{tpu_custom_call.1} parent=1 // pred_fallthru
      _
    // Predicated region
    $region22: #{tpu_custom_call.1} parent=1 // pred_check
      _
    $region23: #{tpu_custom_call.1} parent=1 // pred_check_branch
      %68 = sbr.rel (0) target = $region25
    $region24: #{tpu_custom_call.1} parent=1 // pred_region
      %69 = dma.done [#allocation4], 128
    $region25: #{tpu_custom_call.1} parent=1 // pred_fallthru
      _
    %70 = vsyncpa [#allocation3], 1
    %71 = vsyncpa [#allocation6], 1
    %72 = vsyncpa [#allocation4], 1

</llo_original>
